<compile_context>
chip_gen: v6e
topology: v6e:2x2x1
jax: 0.10.0
libtpu: 0.0.40
codegen_flags: <defaults>
</compile_context>

<pallas_src>
import jax
import jax.numpy as jnp
from jax import lax
from jax.experimental import pallas as pl
from jax.experimental.pallas import tpu as pltpu


# ----------------------------------------------------------------------------
# Kernel 1: fused depthwise-3x3 + pointwise-1x1 conv (lane-dense) + BN partials
# ----------------------------------------------------------------------------
def _conv_stats_kernel(x_ref, halo_ref, b_ref, beff_ref, y_ref, stats_ref):
    # x_ref    : (1, TH, W*Cin)     lane-dense row tile (lane l = w*Cin + c)
    # halo_ref : (1, 1, 2, W*Cin)   [row above tile, row below tile] (zeros at edges)
    # b_ref    : (3, W*Cin, W*Cout) banded fused weights, one matrix per kh tap
    # beff_ref : (1, W*Cout)        folded conv bias (b_pw + b_dw @ w_pw), tiled W times
    # y_ref    : (1, TH, W*Cout)    lane-dense conv output tile
    # stats_ref: (1, 1, 2, W*Cout)  row-sums of (y - b_eff) and (y - b_eff)^2
    xt = x_ref[0]                                   # (TH, W*Cin)
    halo = halo_ref[0, 0]                           # (2,  W*Cin)
    top = halo[0:1]                                 # row above the tile
    bot = halo[1:2]                                 # row below the tile

    # Row-shifted views for kh = 0 / 2 (kh = 1 is xt itself).  The kw shifts and the
    # W-edge zero padding live inside the banded matrices, so no padded slab and no
    # per-tap shifted copies are built.
    row_m1 = jnp.concatenate([top, xt[:-1]], axis=0)     # x[r-1]
    row_p1 = jnp.concatenate([xt[1:], bot], axis=0)      # x[r+1]

    # Whole conv = 3 MXU matmuls accumulated in f32 (MXU is otherwise idle here).
    acc = jnp.dot(row_m1, b_ref[0], preferred_element_type=jnp.float32)
    acc = acc + jnp.dot(xt, b_ref[1], preferred_element_type=jnp.float32)
    acc = acc + jnp.dot(row_p1, b_ref[2], preferred_element_type=jnp.float32)

    y_ref[0] = acc + beff_ref[0]

    # One-pass BN partials on the mean-shifted signal (acc = y - b_eff), reduced over
    # rows only; the lane-dense (w, co) structure is reduced cheaply in the wrapper.
    ssum = jnp.sum(acc, axis=0, keepdims=True)            # (1, W*Cout)
    ssq = jnp.sum(acc * acc, axis=0, keepdims=True)       # (1, W*Cout)
    stats_ref[0, 0] = jnp.concatenate([ssum, ssq], axis=0)


# ----------------------------------------------------------------------------
# Kernel 2: folded BatchNorm (y*scale + offset) + ReLU, lane-dense, in place
# ----------------------------------------------------------------------------
def _bn_relu_kernel(y_ref, scale_ref, off_ref, o_ref):
    # y_ref/o_ref : (R, W*Cout) big lane-dense row blocks (aliased in place)
    # scale/off   : (1, W*Cout) per-channel BN scale/offset tiled W times
    o_ref[...] = jnp.maximum(y_ref[...] * scale_ref[0] + off_ref[0], 0.0)


# ----------------------------------------------------------------------------
# Wrapper helpers
# ----------------------------------------------------------------------------
def _pick_tile(nrows, row_bytes, fixed_bytes=0, budget=6 << 20, min_steps=1):
    """Largest row tile (multiple of 8 dividing nrows) whose working set fits the
    budget, preferring at least `min_steps` grid steps so the DMA pipeline / second
    TensorCore has independent work."""
    cands = [t for t in range(8, nrows + 1, 8) if nrows % t == 0]
    if not cands:
        return nrows
    fits = [t for t in cands if fixed_bytes + t * row_bytes <= budget] or [cands[0]]
    multi = [t for t in fits if nrows // t >= min_steps]
    return max(multi) if multi else max(fits)


def _banded_weights(w_dw, w_pw, W):
    """(3, W*Cin, W*Cout) banded matrices:
       B_kh[w_in*Cin+ci, w_out*Cout+co] = w_dw[kh, w_in-w_out+1, ci] * w_pw[ci, co]
       for |w_in - w_out| <= 1, zero otherwise.  Encodes the kw column shifts, the
       padding=1 behaviour at the W edges, and the fused depthwise*pointwise weights."""
    Cin, Cout = w_pw.shape
    wf = w_dw[:, :, :, None] * w_pw[None, None, :, :]         # (3,3,Cin,Cout)
    win = jnp.arange(W * Cin) // Cin
    ci = jnp.arange(W * Cin) % Cin
    wout = jnp.arange(W * Cout) // Cout
    co = jnp.arange(W * Cout) % Cout
    kw = win[:, None] - wout[None, :] + 1                     # (W*Cin, W*Cout)
    valid = (kw >= 0) & (kw <= 2)
    b = wf[:, jnp.clip(kw, 0, 2), ci[:, None], co[None, :]]   # (3, W*Cin, W*Cout)
    return b * valid[None].astype(w_dw.dtype)


@jax.jit
def depthwise_separable_conv(x_nchw, w_dw, b_dw, w_pw, b_pw, gamma, beta, eps=1e-5):
    """x_nchw: (N, Cin, H, W) f32.  Returns (N, Cout, H, W) f32 (training-mode BN).

    Parameter layouts (vs. torch):
      w_dw : (3, 3, Cin)  == depthwise.weight[c, 0, kh, kw]  at [kh, kw, c]
      b_dw : (1, Cin)
      w_pw : (Cin, Cout)  == pointwise.weight[co, ci, 0, 0]  at [ci, co]
      b_pw / gamma / beta : (1, Cout)
    """
    N, Cin, H, W = x_nchw.shape
    Cout = w_pw.shape[1]
    WCi, WCo = W * Cin, W * Cout

    # NCHW -> lane-dense (N, H, W*Cin): channels of adjacent pixels share the lane
    # axis, so small channel counts still use full vregs and unpadded DMAs.
    # TODO(synk): drop this transform (and the final transpose back to NCHW) by
    # keeping the module interface NHWC when embedded in a larger graph; standalone
    # each one is a full HBM round trip done by XLA.
    x_ld = jnp.transpose(x_nchw, (0, 2, 3, 1)).reshape(N, H, WCi)

    # Row-tile size from the true lane-dense footprint: x block + 2 row views +
    # y block + accumulator, with x/y double-buffered, plus the resident banded
    # weights.  ~6 MiB per-block budget keeps double-buffering comfortable on
    # v7x (64 MiB VMEM) as well as v5e/v6e (128 MiB).
    row_bytes = 4 * (4 * WCi + 3 * WCo)
    fixed_bytes = 4 * (3 * WCi * WCo + 4 * WCi + 4 * WCo)
    TH = _pick_tile(H, row_bytes, fixed_bytes, budget=6 << 20,
                    min_steps=2 if N == 1 else 1)
    n_h = H // TH

    # Tiny halo side-tensor: row-tile i needs global rows i*TH-1 and (i+1)*TH
    # (zero outside the image); 2 rows per tile instead of a padded input copy.
    zrow = jnp.zeros((N, 1, WCi), jnp.float32)
    top_rows = jnp.concatenate([zrow, x_ld[:, TH - 1:H - 1:TH]], axis=1)  # (N, n_h, WCi)
    bot_rows = jnp.concatenate([x_ld[:, TH:H:TH], zrow], axis=1)          # (N, n_h, WCi)
    halos = jnp.stack([top_rows, bot_rows], axis=2)                        # (N, n_h, 2, WCi)

    # Fused banded weights + folded conv bias, tiled to the lane-dense layout.
    # TODO(synk): for large channel counts (Cin >= ~128) a channels-on-lanes MXU path
    # with plain (TH*W, Cin) x (Cin, Cout) matmuls (bf16 operands on v6e/v7x) is
    # preferable; the banded matrices grow as W^2 * Cin * Cout.
    bmat = _banded_weights(w_dw, w_pw, W)                                  # (3, WCi, WCo)
    beff = (b_pw + b_dw @ w_pw)[0]                                         # (Cout,)
    beff_t = jnp.tile(beff, W).reshape(1, WCo)

    cparams = pltpu.CompilerParams(
        dimension_semantics=("parallel", "parallel"),
        vmem_limit_bytes=48 * 1024 * 1024,
    )

    y_ld, stats = pl.pallas_call(
        _conv_stats_kernel,
        grid=(N, n_h),
        in_specs=[
            pl.BlockSpec((1, TH, WCi), lambda n, i: (n, i, 0)),
            pl.BlockSpec((1, 1, 2, WCi), lambda n, i: (n, i, 0, 0)),
            pl.BlockSpec((3, WCi, WCo), lambda n, i: (0, 0, 0)),
            pl.BlockSpec((1, WCo), lambda n, i: (0, 0)),
        ],
        out_specs=[
            pl.BlockSpec((1, TH, WCo), lambda n, i: (n, i, 0)),
            pl.BlockSpec((1, 1, 2, WCo), lambda n, i: (n, i, 0, 0)),
        ],
        out_shape=(
            jax.ShapeDtypeStruct((N, H, WCo), jnp.float32),
            jax.ShapeDtypeStruct((N, n_h, 2, WCo), jnp.float32),
        ),
        compiler_params=cparams,
    )(x_ld, halos, bmat, beff_t)

    # Fold training-mode BN into per-channel scale/offset.  The partials are sums of
    # (y - b_eff) and its square, so the single-pass variance is evaluated on a
    # mean-shifted signal (robust against a large folded bias).
    s_c = jnp.sum(jnp.sum(stats[:, :, 0, :], axis=(0, 1)).reshape(W, Cout), axis=0)
    ss_c = jnp.sum(jnp.sum(stats[:, :, 1, :], axis=(0, 1)).reshape(W, Cout), axis=0)
    cnt = jnp.float32(N * H * W)
    e1 = s_c / cnt
    var = jnp.maximum(ss_c / cnt - e1 * e1, 0.0)          # biased variance (train BN)
    mean = e1 + beff
    scale = gamma[0] * lax.rsqrt(var + eps)
    offset = beta[0] - mean * scale
    scale_t = jnp.tile(scale, W).reshape(1, WCo)
    off_t = jnp.tile(offset, W).reshape(1, WCo)

    # Lane-dense BN + ReLU over big row blocks of the flattened output, in place.
    NH = N * H
    y_flat = y_ld.reshape(NH, WCo)
    R = _pick_tile(NH, 4 * 4 * WCo, budget=8 << 20, min_steps=2)
    out_flat = pl.pallas_call(
        _bn_relu_kernel,
        grid=(NH // R,),
        in_specs=[
            pl.BlockSpec((R, WCo), lambda i: (i, 0)),
            pl.BlockSpec((1, WCo), lambda i: (0, 0)),
            pl.BlockSpec((1, WCo), lambda i: (0, 0)),
        ],
        out_specs=pl.BlockSpec((R, WCo), lambda i: (i, 0)),
        out_shape=jax.ShapeDtypeStruct((NH, WCo), jnp.float32),
        input_output_aliases={0: 0},
        compiler_params=pltpu.CompilerParams(
            dimension_semantics=("parallel",),
            vmem_limit_bytes=48 * 1024 * 1024,
        ),
    )(y_flat, scale_t, off_t)

    out_nhwc = out_flat.reshape(N, H, W, Cout)
    return jnp.transpose(out_nhwc, (0, 3, 1, 2))          # back to NCHW


# ----------------------------------------------------------------------------
# Pure-JAX reference mirroring the PyTorch module (training-mode BatchNorm).
# ----------------------------------------------------------------------------
def _reference(x_nchw, w_dw, b_dw, w_pw, b_pw, gamma, beta, eps=1e-5):
    Cin = x_nchw.shape[1]
    w_dw_oihw = jnp.transpose(w_dw, (2, 0, 1))[:, None, :, :]          # (Cin,1,3,3)
    y = lax.conv_general_dilated(
        x_nchw, w_dw_oihw, window_strides=(1, 1), padding=((1, 1), (1, 1)),
        feature_group_count=Cin, dimension_numbers=("NCHW", "OIHW", "NCHW"))
    y = y + b_dw[0][None, :, None, None]
    w_pw_oihw = jnp.transpose(w_pw, (1, 0))[:, :, None, None]          # (Cout,Cin,1,1)
    y = lax.conv_general_dilated(
        y, w_pw_oihw, window_strides=(1, 1), padding=((0, 0), (0, 0)),
        dimension_numbers=("NCHW", "OIHW", "NCHW"))
    y = y + b_pw[0][None, :, None, None]
    mean = jnp.mean(y, axis=(0, 2, 3), keepdims=True)
    var = jnp.mean((y - mean) ** 2, axis=(0, 2, 3), keepdims=True)
    y = (y - mean) * lax.rsqrt(var + eps)
    y = y * gamma[0][None, :, None, None] + beta[0][None, :, None, None]
    return jnp.maximum(y, 0.0)


if __name__ == "__main__":
    N, Cin, Cout, H, W = 2, 4, 8, 16, 16

    key = jax.random.PRNGKey(0)
    kx, k1, k2, k3, k4, k5, k6 = jax.random.split(key, 7)

    x = jax.random.normal(kx, (N, Cin, H, W), dtype=jnp.float32)

    w_dw = jax.random.normal(k1, (3, 3, Cin), dtype=jnp.float32) * 0.2   # torch: (Cin,1,3,3)
    b_dw = jax.random.normal(k2, (1, Cin), dtype=jnp.float32) * 0.1
    w_pw = jax.random.normal(k3, (Cin, Cout), dtype=jnp.float32) * 0.2   # torch: (Cout,Cin,1,1)
    b_pw = jax.random.normal(k4, (1, Cout), dtype=jnp.float32) * 0.1
    gamma = 1.0 + 0.1 * jax.random.normal(k5, (1, Cout), dtype=jnp.float32)
    beta = 0.1 * jax.random.normal(k6, (1, Cout), dtype=jnp.float32)

    out = depthwise_separable_conv(x, w_dw, b_dw, w_pw, b_pw, gamma, beta)
    out = jax.block_until_ready(out)

    ref = _reference(x, w_dw, b_dw, w_pw, b_pw, gamma, beta)
    assert out.shape == (N, Cout, H, W)
    assert jnp.allclose(out, ref, atol=2e-4, rtol=2e-4), "mismatch vs JAX reference"

    print("KERNEL_OK")
</pallas_src>

<mosaic_0001>
module attributes {stable_mosaic.version = 11 : i64} {
  func.func @_conv_stats_kernel(%arg0: i32, %arg1: i32, %arg2: memref<1x16x64xf32, #tpu.memory_space<vmem>>, %arg3: memref<1x1x2x64xf32, #tpu.memory_space<vmem>>, %arg4: memref<3x64x128xf32, #tpu.memory_space<vmem>>, %arg5: memref<1x128xf32, #tpu.memory_space<vmem>>, %arg6: memref<1x16x128xf32, #tpu.memory_space<vmem>>, %arg7: memref<1x1x2x128xf32, #tpu.memory_space<vmem>>) attributes {dimension_semantics = [#tpu.dimension_semantics<parallel>, #tpu.dimension_semantics<parallel>], iteration_bounds = array<i64: 2, 1>, scalar_prefetch = 0 : i64, scratch_operands = 0 : i64, tpu.core_type = #tpu.core_type<tc>, window_params = [{transform_indices = @transform_0, window_bounds = array<i64: 1, 16, 64>}, {transform_indices = @transform_1, window_bounds = array<i64: 1, 1, 2, 64>}, {pipeline_mode = #tpu.pipeline_mode<synchronous>, transform_indices = @transform_2, window_bounds = array<i64: 3, 64, 128>}, {pipeline_mode = #tpu.pipeline_mode<synchronous>, transform_indices = @transform_3, window_bounds = array<i64: 1, 128>}, {transform_indices = @transform_4, window_bounds = array<i64: 1, 16, 128>}, {transform_indices = @transform_5, window_bounds = array<i64: 1, 1, 2, 128>}]} {
    %c0 = arith.constant 0 : index
    %c0_0 = arith.constant 0 : index
    %c0_1 = arith.constant 0 : index
    %0 = vector.load %arg2[%c0, %c0_0, %c0_1] : memref<1x16x64xf32, #tpu.memory_space<vmem>>, vector<1x16x64xf32>
    %1 = vector.shape_cast %0 : vector<1x16x64xf32> to vector<16x64xf32>
    %c0_2 = arith.constant 0 : index
    %c0_3 = arith.constant 0 : index
    %c0_4 = arith.constant 0 : index
    %c0_5 = arith.constant 0 : index
    %2 = vector.load %arg3[%c0_2, %c0_3, %c0_4, %c0_5] : memref<1x1x2x64xf32, #tpu.memory_space<vmem>>, vector<1x1x2x64xf32>
    %3 = vector.shape_cast %2 : vector<1x1x2x64xf32> to vector<2x64xf32>
    %4 = vector.extract_strided_slice %3 {offsets = [0, 0], sizes = [1, 64], strides = [1, 1]} : vector<2x64xf32> to vector<1x64xf32>
    %5 = vector.extract_strided_slice %3 {offsets = [1, 0], sizes = [1, 64], strides = [1, 1]} : vector<2x64xf32> to vector<1x64xf32>
    %6 = vector.extract_strided_slice %1 {offsets = [0, 0], sizes = [15, 64], strides = [1, 1]} : vector<16x64xf32> to vector<15x64xf32>
    %7 = tpu.concatenate %4, %6 in 0 : vector<1x64xf32>, vector<15x64xf32> -> vector<16x64xf32>
    %8 = vector.extract_strided_slice %1 {offsets = [1, 0], sizes = [15, 64], strides = [1, 1]} : vector<16x64xf32> to vector<15x64xf32>
    %9 = tpu.concatenate %8, %5 in 0 : vector<15x64xf32>, vector<1x64xf32> -> vector<16x64xf32>
    %c0_6 = arith.constant 0 : index
    %c0_7 = arith.constant 0 : index
    %c0_8 = arith.constant 0 : index
    %10 = vector.load %arg4[%c0_6, %c0_7, %c0_8] : memref<3x64x128xf32, #tpu.memory_space<vmem>>, vector<1x64x128xf32>
    %11 = vector.shape_cast %10 : vector<1x64x128xf32> to vector<64x128xf32>
    %cst = arith.constant dense<0.000000e+00> : vector<16x128xf32>
    %12 = tpu.matmul %7, %11, %cst {dimension_numbers = #tpu.dot_dimension_numbers<[1], [0], [0], [1], [0, 0, 1, 1], [], []>} : vector<16x64xf32>, vector<64x128xf32>, vector<16x128xf32> -> vector<16x128xf32>
    %c1 = arith.constant 1 : index
    %c0_9 = arith.constant 0 : index
    %c0_10 = arith.constant 0 : index
    %13 = vector.load %arg4[%c1, %c0_9, %c0_10] : memref<3x64x128xf32, #tpu.memory_space<vmem>>, vector<1x64x128xf32>
    %14 = vector.shape_cast %13 : vector<1x64x128xf32> to vector<64x128xf32>
    %cst_11 = arith.constant dense<0.000000e+00> : vector<16x128xf32>
    %15 = tpu.matmul %1, %14, %cst_11 {dimension_numbers = #tpu.dot_dimension_numbers<[1], [0], [0], [1], [0, 0, 1, 1], [], []>} : vector<16x64xf32>, vector<64x128xf32>, vector<16x128xf32> -> vector<16x128xf32>
    %16 = arith.addf %12, %15 : vector<16x128xf32>
    %c2 = arith.constant 2 : index
    %c0_12 = arith.constant 0 : index
    %c0_13 = arith.constant 0 : index
    %17 = vector.load %arg4[%c2, %c0_12, %c0_13] : memref<3x64x128xf32, #tpu.memory_space<vmem>>, vector<1x64x128xf32>
    %18 = vector.shape_cast %17 : vector<1x64x128xf32> to vector<64x128xf32>
    %cst_14 = arith.constant dense<0.000000e+00> : vector<16x128xf32>
    %19 = tpu.matmul %9, %18, %cst_14 {dimension_numbers = #tpu.dot_dimension_numbers<[1], [0], [0], [1], [0, 0, 1, 1], [], []>} : vector<16x64xf32>, vector<64x128xf32>, vector<16x128xf32> -> vector<16x128xf32>
    %20 = arith.addf %16, %19 : vector<16x128xf32>
    %c0_15 = arith.constant 0 : index
    %c0_16 = arith.constant 0 : index
    %21 = vector.load %arg5[%c0_15, %c0_16] : memref<1x128xf32, #tpu.memory_space<vmem>>, vector<1x128xf32>
    %22 = vector.shape_cast %21 : vector<1x128xf32> to vector<128xf32>
    %23 = vector.shape_cast %22 : vector<128xf32> to vector<1x128xf32>
    %24 = vector.broadcast %23 : vector<1x128xf32> to vector<16x128xf32>
    %25 = arith.addf %20, %24 : vector<16x128xf32>
    %c0_17 = arith.constant 0 : index
    %c0_18 = arith.constant 0 : index
    %c0_19 = arith.constant 0 : index
    %26 = vector.load %arg6[%c0_17, %c0_18, %c0_19] : memref<1x16x128xf32, #tpu.memory_space<vmem>>, vector<1x16x128xf32>
    %27 = vector.shape_cast %26 : vector<1x16x128xf32> to vector<16x128xf32>
    %28 = vector.shape_cast %25 : vector<16x128xf32> to vector<1x16x128xf32>
    tpu.vector_store %arg6[%c0_17, %c0_18, %c0_19], %28 {strides = array<i32>} : memref<1x16x128xf32, #tpu.memory_space<vmem>>, vector<1x16x128xf32>,
    %cst_20 = arith.constant dense<0.000000e+00> : vector<128xf32>
    %29 = vector.multi_reduction <add>, %20, %cst_20 [0] : vector<16x128xf32> to vector<128xf32>
    %30 = vector.shape_cast %29 : vector<128xf32> to vector<1x128xf32>
    %31 = arith.mulf %20, %20 : vector<16x128xf32>
    %cst_21 = arith.constant dense<0.000000e+00> : vector<128xf32>
    %32 = vector.multi_reduction <add>, %31, %cst_21 [0] : vector<16x128xf32> to vector<128xf32>
    %33 = vector.shape_cast %32 : vector<128xf32> to vector<1x128xf32>
    %34 = tpu.concatenate %30, %33 in 0 : vector<1x128xf32>, vector<1x128xf32> -> vector<2x128xf32>
    %c0_22 = arith.constant 0 : index
    %c0_23 = arith.constant 0 : index
    %c0_24 = arith.constant 0 : index
    %c0_25 = arith.constant 0 : index
    %35 = vector.load %arg7[%c0_22, %c0_23, %c0_24, %c0_25] : memref<1x1x2x128xf32, #tpu.memory_space<vmem>>, vector<1x1x2x128xf32>
    %36 = vector.shape_cast %35 : vector<1x1x2x128xf32> to vector<2x128xf32>
    %37 = vector.shape_cast %34 : vector<2x128xf32> to vector<1x1x2x128xf32>
    tpu.vector_store %arg7[%c0_22, %c0_23, %c0_24, %c0_25], %37 {strides = array<i32>} : memref<1x1x2x128xf32, #tpu.memory_space<vmem>>, vector<1x1x2x128xf32>,
    return
  }
  func.func @transform_0(%arg0: i32, %arg1: i32) -> (i32, i32, i32) {
    %c0_i32 = arith.constant 0 : i32
    %c0_i32_0 = arith.constant 0 : i32
    return %arg0, %arg1, %c0_i32 : i32, i32, i32
  }
  func.func @transform_1(%arg0: i32, %arg1: i32) -> (i32, i32, i32, i32) {
    %c0_i32 = arith.constant 0 : i32
    %c0_i32_0 = arith.constant 0 : i32
    %c0_i32_1 = arith.constant 0 : i32
    return %arg0, %arg1, %c0_i32, %c0_i32_0 : i32, i32, i32, i32
  }
  func.func @transform_2(%arg0: i32, %arg1: i32) -> (i32, i32, i32) {
    %c0_i32 = arith.constant 0 : i32
    %c0_i32_0 = arith.constant 0 : i32
    %c0_i32_1 = arith.constant 0 : i32
    %c0_i32_2 = arith.constant 0 : i32
    return %c0_i32, %c0_i32_0, %c0_i32_1 : i32, i32, i32
  }
  func.func @transform_3(%arg0: i32, %arg1: i32) -> (i32, i32) {
    %c0_i32 = arith.constant 0 : i32
    %c0_i32_0 = arith.constant 0 : i32
    %c0_i32_1 = arith.constant 0 : i32
    return %c0_i32, %c0_i32_0 : i32, i32
  }
  func.func @transform_4(%arg0: i32, %arg1: i32) -> (i32, i32, i32) {
    %c0_i32 = arith.constant 0 : i32
    %c0_i32_0 = arith.constant 0 : i32
    return %arg0, %arg1, %c0_i32 : i32, i32, i32
  }
  func.func @transform_5(%arg0: i32, %arg1: i32) -> (i32, i32, i32, i32) {
    %c0_i32 = arith.constant 0 : i32
    %c0_i32_0 = arith.constant 0 : i32
    %c0_i32_1 = arith.constant 0 : i32
    return %arg0, %arg1, %c0_i32, %c0_i32_0 : i32, i32, i32, i32
  }
}

module attributes {stable_mosaic.version = 11 : i64} {
  func.func @_bn_relu_kernel(%arg0: i32, %arg1: memref<16x128xf32, #tpu.memory_space<vmem>>, %arg2: memref<1x128xf32, #tpu.memory_space<vmem>>, %arg3: memref<1x128xf32, #tpu.memory_space<vmem>>, %arg4: memref<16x128xf32, #tpu.memory_space<vmem>>) attributes {dimension_semantics = [#tpu.dimension_semantics<parallel>], iteration_bounds = array<i64: 2>, scalar_prefetch = 0 : i64, scratch_operands = 0 : i64, tpu.core_type = #tpu.core_type<tc>, window_params = [{transform_indices = @transform_0, window_bounds = array<i64: 16, 128>}, {pipeline_mode = #tpu.pipeline_mode<synchronous>, transform_indices = @transform_1, window_bounds = array<i64: 1, 128>}, {pipeline_mode = #tpu.pipeline_mode<synchronous>, transform_indices = @transform_2, window_bounds = array<i64: 1, 128>}, {transform_indices = @transform_3, window_bounds = array<i64: 16, 128>}]} {
    %c0 = arith.constant 0 : index
    %c0_0 = arith.constant 0 : index
    %0 = vector.load %arg1[%c0, %c0_0] : memref<16x128xf32, #tpu.memory_space<vmem>>, vector<16x128xf32>
    %c0_1 = arith.constant 0 : index
    %c0_2 = arith.constant 0 : index
    %1 = vector.load %arg2[%c0_1, %c0_2] : memref<1x128xf32, #tpu.memory_space<vmem>>, vector<1x128xf32>
    %2 = vector.shape_cast %1 : vector<1x128xf32> to vector<128xf32>
    %3 = vector.shape_cast %2 : vector<128xf32> to vector<1x128xf32>
    %4 = vector.broadcast %3 : vector<1x128xf32> to vector<16x128xf32>
    %5 = arith.mulf %0, %4 : vector<16x128xf32>
    %c0_3 = arith.constant 0 : index
    %c0_4 = arith.constant 0 : index
    %6 = vector.load %arg3[%c0_3, %c0_4] : memref<1x128xf32, #tpu.memory_space<vmem>>, vector<1x128xf32>
    %7 = vector.shape_cast %6 : vector<1x128xf32> to vector<128xf32>
    %8 = vector.shape_cast %7 : vector<128xf32> to vector<1x128xf32>
    %9 = vector.broadcast %8 : vector<1x128xf32> to vector<16x128xf32>
    %10 = arith.addf %5, %9 : vector<16x128xf32>
    %cst = arith.constant 0.000000e+00 : f32
    %11 = vector.broadcast %cst : f32 to vector<16x128xf32>
    %12 = arith.maximumf %10, %11 : vector<16x128xf32>
    %c0_5 = arith.constant 0 : index
    %c0_6 = arith.constant 0 : index
    %13 = vector.load %arg4[%c0_5, %c0_6] : memref<16x128xf32, #tpu.memory_space<vmem>>, vector<16x128xf32>
    tpu.vector_store %arg4[%c0_5, %c0_6], %12 {strides = array<i32>} : memref<16x128xf32, #tpu.memory_space<vmem>>, vector<16x128xf32>,
    return
  }
  func.func @transform_0(%arg0: i32) -> (i32, i32) {
    %c0_i32 = arith.constant 0 : i32
    %c0_i32_0 = arith.constant 0 : i32
    return %arg0, %c0_i32 : i32, i32
  }
  func.func @transform_1(%arg0: i32) -> (i32, i32) {
    %c0_i32 = arith.constant 0 : i32
    %c0_i32_0 = arith.constant 0 : i32
    %c0_i32_1 = arith.constant 0 : i32
    return %c0_i32, %c0_i32_0 : i32, i32
  }
  func.func @transform_2(%arg0: i32) -> (i32, i32) {
    %c0_i32 = arith.constant 0 : i32
    %c0_i32_0 = arith.constant 0 : i32
    %c0_i32_1 = arith.constant 0 : i32
    return %c0_i32, %c0_i32_0 : i32, i32
  }
  func.func @transform_3(%arg0: i32) -> (i32, i32) {
    %c0_i32 = arith.constant 0 : i32
    %c0_i32_0 = arith.constant 0 : i32
    return %arg0, %c0_i32 : i32, i32
  }
}

</mosaic_0001>

<llo_original>
// kernel: tile.16
$region0: #{tile.16}
  #allocation0 [shape = 's32[1]{0}', space=sflag, size = 0x4, scoped, tag = 'scoped memory for tile.16']
  %s0 = inlined_call_operand.vmem [shape: f32[8], index: 0, kind: input, shape index: {}]
  %s1 = inlined_call_operand.vmem [shape: f32[16,8], index: 1, kind: output, shape index: {}]
  // Predicated region
  $region2: #{tile.16} parent=0 // pred_check
    _
  $region3: #{tile.16} parent=0 // pred_check_branch
    %3 = sbr.rel (0) target = $region5
  $region4: #{tile.16} parent=0 // pred_region
    _
  $region5: #{tile.16} parent=0 // pred_fallthru
    _
  %v4 = vld [vmem:[%s0] ss:$0 sm:$0xff]
  %5 = vst [vmem:[%s1] sm:$0xff] %v4
  %s6 = scalar_lea.vmem %s1, 8
  %7 = vst [vmem:[%s6] sm:$0xff] %v4

// kernel: tile.17
$region0: #{tile.17}
  %s0 = inlined_call_operand.vmem [shape: f32[16,8], index: 0, kind: input, shape index: {}]
  %s1 = inlined_call_operand.vmem [shape: f32[1,128], index: 1, kind: output, shape index: {}]
  $region1: #{tile.17} parent=0
    #allocation0 [shape = 'u8[4096]{0}', space=vmem, size = 0x1000, scoped, tag = 'scoped mem for output reshape']
    %v2 = vld [vmem:[%s0] sm:$0x1]
    %vm3 = vcmask 64512
    %4 = vst.msk [vmem:[#allocation0] sm:$0x1] %vm3, %v2
    %s5 = scalar_lea.vmem %s0, 15
    %v6 = vld [vmem:[%s5] sm:$0x1]
    %7 = vrot.lane.b32.xlu0 %v6, 120
    %v8 = vpop.permute.xlu0 %7
    %vm9 = vcmask 1048512
    %10 = vst.msk [vmem:[#allocation0] sm:$0x1] %vm9, %v8
    %s11 = scalar_lea.vmem %s0, 14
    %v12 = vld [vmem:[%s11] sm:$0x1]
    %13 = vrot.lane.b32.xlu0 %v12, 112
    %v14 = vpop.permute.xlu0 %13
    %vm15 = vcmask 982912
    %16 = vst.msk [vmem:[#allocation0] sm:$0x1] %vm15, %v14
    %s17 = scalar_lea.vmem %s0, 13
    %v18 = vld [vmem:[%s17] sm:$0x1]
    %19 = vrot.lane.b32.xlu0 %v18, 104
    %v20 = vpop.permute.xlu0 %19
    %vm21 = vcmask 917312
    %22 = vst.msk [vmem:[#allocation0] sm:$0x1] %vm21, %v20
    %s23 = scalar_lea.vmem %s0, 12
    %v24 = vld [vmem:[%s23] sm:$0x1]
    %25 = vrot.lane.b32.xlu0 %v24, 96
    %v26 = vpop.permute.xlu0 %25
    %vm27 = vcmask 851712
    %28 = vst.msk [vmem:[#allocation0] sm:$0x1] %vm27, %v26
    %s29 = scalar_lea.vmem %s0, 11
    %v30 = vld [vmem:[%s29] sm:$0x1]
    %31 = vrot.lane.b32.xlu0 %v30, 88
    %v32 = vpop.permute.xlu0 %31
    %vm33 = vcmask 786112
    %34 = vst.msk [vmem:[#allocation0] sm:$0x1] %vm33, %v32
    %s35 = scalar_lea.vmem %s0, 10
    %v36 = vld [vmem:[%s35] sm:$0x1]
    %37 = vrot.lane.b32.xlu0 %v36, 80
    %v38 = vpop.permute.xlu0 %37
    %vm39 = vcmask 720512
    %40 = vst.msk [vmem:[#allocation0] sm:$0x1] %vm39, %v38
    %s41 = scalar_lea.vmem %s0, 9
    %v42 = vld [vmem:[%s41] sm:$0x1]
    %43 = vrot.lane.b32.xlu0 %v42, 72
    %v44 = vpop.permute.xlu0 %43
    %vm45 = vcmask 654912
    %46 = vst.msk [vmem:[#allocation0] sm:$0x1] %vm45, %v44
    %s47 = scalar_lea.vmem %s0, 8
    %v48 = vld [vmem:[%s47] sm:$0x1]
    %49 = vrot.lane.b32.xlu0 %v48, 64
    %v50 = vpop.permute.xlu0 %49
    %vm51 = vcmask 589312
    %52 = vst.msk [vmem:[#allocation0] sm:$0x1] %vm51, %v50
    %s53 = scalar_lea.vmem %s0, 7
    %v54 = vld [vmem:[%s53] sm:$0x1]
    %55 = vrot.lane.b32.xlu0 %v54, 56
    %v56 = vpop.permute.xlu0 %55
    %vm57 = vcmask 523712
    %58 = vst.msk [vmem:[#allocation0] sm:$0x1] %vm57, %v56
    %s59 = scalar_lea.vmem %s0, 6
    %v60 = vld [vmem:[%s59] sm:$0x1]
    %61 = vrot.lane.b32.xlu0 %v60, 48
    %v62 = vpop.permute.xlu0 %61
    %vm63 = vcmask 458112
    %64 = vst.msk [vmem:[#allocation0] sm:$0x1] %vm63, %v62
    %s65 = scalar_lea.vmem %s0, 5
    %v66 = vld [vmem:[%s65] sm:$0x1]
    %67 = vrot.lane.b32.xlu0 %v66, 40
    %v68 = vpop.permute.xlu0 %67
    %vm69 = vcmask 392512
    %70 = vst.msk [vmem:[#allocation0] sm:$0x1] %vm69, %v68
    %s71 = scalar_lea.vmem %s0, 4
    %v72 = vld [vmem:[%s71] sm:$0x1]
    %73 = vrot.lane.b32.xlu0 %v72, 32
    %v74 = vpop.permute.xlu0 %73
    %vm75 = vcmask 326912
    %76 = vst.msk [vmem:[#allocation0] sm:$0x1] %vm75, %v74
    %s77 = scalar_lea.vmem %s0, 3
    %v78 = vld [vmem:[%s77] sm:$0x1]
    %79 = vrot.lane.b32.xlu0 %v78, 24
    %v80 = vpop.permute.xlu0 %79
    %vm81 = vcmask 261312
    %82 = vst.msk [vmem:[#allocation0] sm:$0x1] %vm81, %v80
    %s83 = scalar_lea.vmem %s0, 2
    %v84 = vld [vmem:[%s83] sm:$0x1]
    %85 = vrot.lane.b32.xlu0 %v84, 16
    %v86 = vpop.permute.xlu0 %85
    %vm87 = vcmask 195712
    %88 = vst.msk [vmem:[#allocation0] sm:$0x1] %vm87, %v86
    %s89 = scalar_lea.vmem %s0, 1
    %v90 = vld [vmem:[%s89] sm:$0x1]
    %91 = vrot.lane.b32.xlu0 %v90, 8
    %v92 = vpop.permute.xlu0 %91
    %vm93 = vcmask 130112
    %94 = vst.msk [vmem:[#allocation0] sm:$0x1] %vm93, %v92
    %s96 = sshll.u32 1, 1
    %s97 = ssub.s32 %s96, 1
    %v99 = vld [vmem:[#allocation0] sm:%s97]
    %s100 = sshll.u32 1, 1
    %s101 = ssub.s32 %s100, 1
    %102 = vst [vmem:[%s1] sm:%s101] %v99

// kernel: depthwise_separable_conv.3
$region0: #{depthwise_separable_conv.3}
  #allocation0 [shape = 'u32[]', space=smem, size = 0x4, offset = 0x4, fixed_abs, tag = 'smem constant byte address 0x4 - core index']
  #allocation1 [shape = 'u32[144,128]{1,0:T(1,128)}', space=vmem, size = 0x12000, scoped, tag = 'internal scratch']
  %s0 = inlined_call_operand.vmem [shape: f32[32,128], index: 0, kind: input, shape index: {}, may-alias: {0,3}]
  %s1 = inlined_call_operand.vmem [shape: f32[1,128], index: 1, kind: input, shape index: {}]
  %s2 = inlined_call_operand.vmem [shape: f32[1,128], index: 2, kind: input, shape index: {}]
  %s3 = inlined_call_operand.vmem [shape: f32[32,128], index: 3, kind: output, shape index: {}, may-alias: {0,3}]
  %s4 = sld [smem:[#allocation0]]
  $region45: #{depthwise_separable_conv.3} parent=0
    _
  %s6 = ssub.s32 1, %s4
  %s7 = scalar_select 0, %s6, %s4
  loop: start=0, step=1, limit=4
  $region2: #{depthwise_separable_conv.3} parent=0 // loop_pre_header
    _
  $region3: #{depthwise_separable_conv.3} parent=0 // loop_header
    %s9 = sphi 0, %s13
    %p10 = scmp.ge.s32.totalorder %s9, 4
    %s19 = sphi 0, %s21
    %s22 = sphi 0, %s19
    %s23 = sphi 0, %s22
    %s39 = sphi 0, %s23
    %s43 = sphi 0, %s43
    %s45 = sphi 0, %s43
    %s46 = sphi 0, %s45
    %s60 = sphi 0, %s46
    %s64 = sphi 0, %s64
    %s66 = sphi 0, %s64
    %s67 = sphi 0, %s66
    %s81 = sphi 0, %s67
    %s87 = sphi 0, %s89
    %s90 = sphi 0, %s87
    %s91 = sphi 0, %s90
    %s107 = sphi 0, %s91
  $region4: #{depthwise_separable_conv.3} parent=0 // loop_header_branch
    %12 = sbr.rel (%p10) target = $region8
  $region5: #{depthwise_separable_conv.3} parent=0 // loop_body
    %s14 = ssub.s32 %s9, 1
    %s15 = ssub.s32 %s9, 2
    %s16 = sadd.s32 %s9, 1
    %s17 = ssub.s32 %s9, %s16
    %p18 = scmp.eq.s32.totalorder %s17, 0
    %s20 = sadd.s32 %s19, 1
    %s21 = scalar_select %p18, %s19, %s20
    %p24 = pneg %p18
    %p25 = scmp.eq.s32.totalorder %s9, 1
    %p26 = por %p24, %p25
    %p27 = scmp.ne.s32.totalorder %s19, %s22
    %p28 = scmp.eq.s32.totalorder %s9, 0
    %p29 = por %p27, %p28
    %p30 = scmp.ne.s32.totalorder %s19, %s22
    %p31 = scmp.eq.s32.totalorder %s14, 1
    %p32 = por %p30, %p31
    %p33 = scmp.ne.s32.totalorder %s22, %s23
    %p34 = scmp.eq.s32.totalorder %s14, 0
    %p35 = por %p33, %p34
    %p36 = scmp.ne.s32.totalorder %s22, %s23
    %p37 = scmp.eq.s32.totalorder %s15, 1
    %p38 = por %p36, %p37
    %p40 = scmp.ne.s32.totalorder %s23, %s39
    %p41 = scmp.eq.s32.totalorder %s15, 0
    %p42 = por %p40, %p41
    %s44 = sadd.s32 %s43, 1
    %p47 = scmp.eq.s32.totalorder %s9, 1
    %p48 = scmp.ne.s32.totalorder %s43, %s45
    %p49 = scmp.eq.s32.totalorder %s9, 0
    %p50 = por %p48, %p49
    %p51 = scmp.ne.s32.totalorder %s43, %s45
    %p52 = scmp.eq.s32.totalorder %s14, 1
    %p53 = por %p51, %p52
    %p54 = scmp.ne.s32.totalorder %s45, %s46
    %p55 = scmp.eq.s32.totalorder %s14, 0
    %p56 = por %p54, %p55
    %p57 = scmp.ne.s32.totalorder %s45, %s46
    %p58 = scmp.eq.s32.totalorder %s15, 1
    %p59 = por %p57, %p58
    %p61 = scmp.ne.s32.totalorder %s46, %s60
    %p62 = scmp.eq.s32.totalorder %s15, 0
    %p63 = por %p61, %p62
    %s65 = sadd.s32 %s64, 1
    %p68 = scmp.eq.s32.totalorder %s9, 1
    %p69 = scmp.ne.s32.totalorder %s64, %s66
    %p70 = scmp.eq.s32.totalorder %s9, 0
    %p71 = por %p69, %p70
    %p72 = scmp.ne.s32.totalorder %s64, %s66
    %p73 = scmp.eq.s32.totalorder %s14, 1
    %p74 = por %p72, %p73
    %p75 = scmp.ne.s32.totalorder %s66, %s67
    %p76 = scmp.eq.s32.totalorder %s14, 0
    %p77 = por %p75, %p76
    %p78 = scmp.ne.s32.totalorder %s66, %s67
    %p79 = scmp.eq.s32.totalorder %s15, 1
    %p80 = por %p78, %p79
    %p82 = scmp.ne.s32.totalorder %s67, %s81
    %p83 = scmp.eq.s32.totalorder %s15, 0
    %p84 = por %p82, %p83
    %s85 = ssub.s32 %s9, %s16
    %p86 = scmp.eq.s32.totalorder %s85, 0
    %s88 = sadd.s32 %s87, 1
    %s89 = scalar_select %p86, %s87, %s88
    %p92 = pneg %p86
    %p93 = scmp.eq.s32.totalorder %s9, 1
    %p94 = por %p92, %p93
    %p95 = scmp.ne.s32.totalorder %s87, %s90
    %p96 = scmp.eq.s32.totalorder %s9, 0
    %p97 = por %p95, %p96
    %p98 = scmp.ne.s32.totalorder %s87, %s90
    %p99 = scmp.eq.s32.totalorder %s14, 1
    %p100 = por %p98, %p99
    %p101 = scmp.ne.s32.totalorder %s90, %s91
    %p102 = scmp.eq.s32.totalorder %s14, 0
    %p103 = por %p101, %p102
    %p104 = scmp.ne.s32.totalorder %s90, %s91
    %p105 = scmp.eq.s32.totalorder %s15, 1
    %p106 = por %p104, %p105
    %p108 = scmp.ne.s32.totalorder %s91, %s107
    %p109 = scmp.eq.s32.totalorder %s15, 0
    %p110 = por %p108, %p109
    %p111 = scmp.le.s32.totalorder 1, %s9
    %p112 = scmp.lt.s32.totalorder %s9, 3
    %p113 = pnand %p111, %p112
    %p114 = pneg %p113
    // Predicated region
    $region9: #{depthwise_separable_conv.3} parent=5 // pred_check
      _
    $region10: #{depthwise_separable_conv.3} parent=5 // pred_check_branch
      %116 = sbr.rel (%p113) target = $region12
    $region11: #{depthwise_separable_conv.3} parent=5 // pred_region
      %s117 = ssub.s32 %s9, 1
      // Predicated region
      $region13: #{depthwise_separable_conv.3} parent=11 // pred_check
        %p118 = pneg %p56
      $region14: #{depthwise_separable_conv.3} parent=11 // pred_check_branch
        %120 = sbr.rel (%p118) target = $region16
      $region15: #{depthwise_separable_conv.3} parent=11 // pred_region
        _
      $region16: #{depthwise_separable_conv.3} parent=11 // pred_fallthru
        _
      // Predicated region
      $region17: #{depthwise_separable_conv.3} parent=11 // pred_check
        %p121 = pneg %p77
      $region18: #{depthwise_separable_conv.3} parent=11 // pred_check_branch
        %123 = sbr.rel (%p121) target = $region20
      $region19: #{depthwise_separable_conv.3} parent=11 // pred_region
        _
      $region20: #{depthwise_separable_conv.3} parent=11 // pred_fallthru
        _
    $region12: #{depthwise_separable_conv.3} parent=5 // pred_fallthru
      _
    %p124 = scmp.lt.s32.totalorder %s9, 2
    // Predicated region
    $region21: #{depthwise_separable_conv.3} parent=5 // pred_check
      %p125 = pneg %p124
    $region22: #{depthwise_separable_conv.3} parent=5 // pred_check_branch
      %127 = sbr.rel (%p125) target = $region24
    $region23: #{depthwise_separable_conv.3} parent=5 // pred_region
      // Predicated region
      $region25: #{depthwise_separable_conv.3} parent=23 // pred_check
        %p128 = pneg %p29
      $region26: #{depthwise_separable_conv.3} parent=23 // pred_check_branch
        %130 = sbr.rel (%p128) target = $region28
      $region27: #{depthwise_separable_conv.3} parent=23 // pred_region
        %s131 = smul.u32 2, %s9
        %p132 = scmp.lt.s32.totalorder %s131, 3
        %s133 = scalar_select %p132, %s131, 3
        %s134 = smul.addr %s133, 8
        %s135 = scalar_lea.vmem %s0, %s134
        %s136 = smul.u32 2, %s9
      $region28: #{depthwise_separable_conv.3} parent=23 // pred_fallthru
        _
    $region24: #{depthwise_separable_conv.3} parent=5 // pred_fallthru
      _
    %p137 = scmp.le.s32.totalorder 1, %s9
    %p138 = scmp.lt.s32.totalorder %s9, 3
    %p139 = pnand %p137, %p138
    %p140 = pneg %p139
    // Predicated region
    $region29: #{depthwise_separable_conv.3} parent=5 // pred_check
      _
    $region30: #{depthwise_separable_conv.3} parent=5 // pred_check_branch
      %142 = sbr.rel (%p139) target = $region32
    $region31: #{depthwise_separable_conv.3} parent=5 // pred_region
      %s143 = ssub.s32 %s9, 1
      %s144 = smul.u32 2, %s14
      %p145 = scmp.lt.s32.totalorder %s144, 3
      %s146 = scalar_select %p145, %s144, 3
      %s147 = smul.addr %s146, 8
      %s148 = scalar_lea.vmem %s0, %s147
      %p149 = pneg %p35
      %p150 = pneg %p32
      %p151 = pneg %p56
      %p152 = pneg %p53
      %p153 = pneg %p77
      %p154 = pneg %p74
      %p155 = pneg %p103
      %p156 = pneg %p100
      %s157 = smul.u32 2, %s14
      %p158 = scmp.lt.s32.totalorder %s157, 3
      %s159 = scalar_select %p158, %s157, 3
      %s160 = smul.addr %s159, 8
      %s161 = scalar_lea.vmem %s3, %s160
      %s162 = smul.u32 2, %s14
      %p163 = scmp.lt.s32.totalorder %s162, 3
      %s164 = scalar_select %p163, %s162, 3
      %s165 = smul.addr %s164, 8
      %s166 = scalar_lea.vmem %s0, %s165
      %s167 = smul.u32 2, %s14
      %s168 = smul.u32 2, %s14
      %p169 = scmp.lt.s32.totalorder %s168, 3
      %s170 = scalar_select %p169, %s168, 3
      %s171 = smul.addr %s170, 8
      %s172 = scalar_lea.vmem %s3, %s171
      %s173 = smul.u32 2, %s14
      %v174 = vld [vmem:[%s166] sm:$0xff]
      %v175 = vld [vmem:[%s166 + $0x8] sm:$0xff]
      %v176 = vld [vmem:[%s1] sm:$0x1]
      %v178 = vlaneseq
      %v179 = vshrl.u32 %v178, 7
      %v180 = vsub.s32 0, %v179
      %v181 = vrot.slane %v176, %v180
      %v183 = vmul.f32 %v174, %v181
      %v184 = vmul.f32 %v175, %v181
      %v185 = vld [vmem:[%s2] sm:$0x1]
      %v187 = vlaneseq
      %v188 = vshrl.u32 %v187, 7
      %v189 = vsub.s32 0, %v188
      %v190 = vrot.slane %v185, %v189
      %v192 = vadd.f32 %v183, %v190
      %v193 = vadd.f32 %v184, %v190
      %v194 = vmax.f32 %v192, 0.0
      %v195 = vmax.f32 %v193, 0.0
      %196 = vst [vmem:[%s172] sm:$0xff] %v194
      %197 = vst [vmem:[%s172 + $0x8] sm:$0xff] %v195
      %s198 = smul.u32 2, %s14
      %p199 = scmp.lt.s32.totalorder %s198, 3
      %s200 = scalar_select %p199, %s198, 3
      %s201 = smul.addr %s200, 8
      %s202 = scalar_lea.vmem %s3, %s201
      // Predicated region
      $region33: #{depthwise_separable_conv.3} parent=31 // pred_check
        %p203 = pneg %p100
      $region34: #{depthwise_separable_conv.3} parent=31 // pred_check_branch
        %205 = sbr.rel (%p203) target = $region36
      $region35: #{depthwise_separable_conv.3} parent=31 // pred_region
        %s206 = smul.u32 2, %s14
      $region36: #{depthwise_separable_conv.3} parent=31 // pred_fallthru
        _
    $region32: #{depthwise_separable_conv.3} parent=5 // pred_fallthru
      _
    %p207 = scmp.le.s32.totalorder 2, %s9
    // Predicated region
    $region37: #{depthwise_separable_conv.3} parent=5 // pred_check
      %p208 = pneg %p207
    $region38: #{depthwise_separable_conv.3} parent=5 // pred_check_branch
      %210 = sbr.rel (%p208) target = $region40
    $region39: #{depthwise_separable_conv.3} parent=5 // pred_region
      %s211 = ssub.s32 %s9, 2
      // Predicated region
      $region41: #{depthwise_separable_conv.3} parent=39 // pred_check
        %p212 = pneg %p106
      $region42: #{depthwise_separable_conv.3} parent=39 // pred_check_branch
        %214 = sbr.rel (%p212) target = $region44
      $region43: #{depthwise_separable_conv.3} parent=39 // pred_region
        %s215 = smul.u32 2, %s15
        %p216 = scmp.lt.s32.totalorder %s215, 3
        %s217 = scalar_select %p216, %s215, 3
        %s218 = smul.addr %s217, 8
        %s219 = scalar_lea.vmem %s3, %s218
      $region44: #{depthwise_separable_conv.3} parent=39 // pred_fallthru
        _
    $region40: #{depthwise_separable_conv.3} parent=5 // pred_fallthru
      _
  $region6: #{depthwise_separable_conv.3} parent=0 // loop_footer
    %s13 = sadd.s32 1, %s9
  $region7: #{depthwise_separable_conv.3} parent=0 // loop_footer_branch
    %8 = sbr.rel target = $region3
  $region8: #{depthwise_separable_conv.3} parent=0 // loop_exit
    _

// kernel: depthwise_separable_conv.2
$region0: #{depthwise_separable_conv.2}
  #allocation0 [shape = 'u32[]', space=smem, size = 0x4, offset = 0x4, fixed_abs, tag = 'smem constant byte address 0x4 - core index']
  #allocation1 [shape = 'u32[144,128]{1,0:T(1,128)}', space=vmem, size = 0x12000, scoped, tag = 'internal scratch']
  %s0 = inlined_call_operand.vmem [shape: f32[2,16,64], index: 0, kind: input, shape index: {}]
  %s1 = inlined_call_operand.vmem [shape: f32[2,1,2,64], index: 1, kind: input, shape index: {}]
  %s2 = inlined_call_operand.vmem [shape: f32[3,64,128], index: 2, kind: input, shape index: {}]
  %s3 = inlined_call_operand.vmem [shape: f32[1,128], index: 3, kind: input, shape index: {}]
  %s4 = inlined_call_operand.vmem [shape: f32[2,16,128], index: 4, kind: output, shape index: {0}]
  %s5 = inlined_call_operand.vmem [shape: f32[2,1,2,128], index: 5, kind: output, shape index: {1}]
  %6 = xla_tuple %s4, %s5
  %s7 = sld [smem:[#allocation0]]
  $region57: #{depthwise_separable_conv.2} parent=0
    _
  %s9 = ssub.s32 1, %s7
  %s10 = scalar_select 0, %s9, %s7
  loop: start=0, step=1, limit=4
  $region2: #{depthwise_separable_conv.2} parent=0 // loop_pre_header
    _
  $region3: #{depthwise_separable_conv.2} parent=0 // loop_header
    %s12 = sphi 0, %s16
    %p13 = scmp.ge.s32.totalorder %s12, 4
    %s19 = sphi 0, %s31
    %s20 = sphi 0, %s27
    %s21 = sphi 0, %s19
    %s22 = sphi 0, %s20
    %s23 = sphi 0, %s21
    %s24 = sphi 0, %s22
    %s36 = sphi 0, %s38
    %s39 = sphi 0, %s36
    %s40 = sphi 0, %s39
    %s56 = sphi 0, %s40
    %s64 = sphi 0, %s66
    %s67 = sphi 0, %s64
    %s68 = sphi 0, %s67
    %s84 = sphi 0, %s68
    %s88 = sphi 0, %s88
    %s90 = sphi 0, %s88
    %s91 = sphi 0, %s90
    %s105 = sphi 0, %s91
    %s109 = sphi 0, %s109
    %s111 = sphi 0, %s109
    %s112 = sphi 0, %s111
    %s126 = sphi 0, %s112
    %s134 = sphi 0, %s136
    %s137 = sphi 0, %s134
    %s138 = sphi 0, %s137
    %s154 = sphi 0, %s138
    %s162 = sphi 0, %s164
    %s165 = sphi 0, %s162
    %s166 = sphi 0, %s165
    %s182 = sphi 0, %s166
  $region4: #{depthwise_separable_conv.2} parent=0 // loop_header_branch
    %15 = sbr.rel (%p13) target = $region8
  $region5: #{depthwise_separable_conv.2} parent=0 // loop_body
    %s17 = ssub.s32 %s12, 1
    %s18 = ssub.s32 %s12, 2
    %s25 = sadd.s32 1, %s20
    %p26 = scmp.ge.s32.totalorder %s25, 1
    %s27 = scalar_select %p26, 0, %s25
    %s28 = sadd.s32 1, %s19
    %s29 = scalar_select %p26, %s28, %s19
    %p30 = scmp.ge.s32.totalorder %s29, 2
    %s31 = scalar_select %p30, 0, %s29
    %s32 = ssub.s32 %s19, %s31
    %s33 = ssub.s32 %s20, %s27
    %s34 = sor.u32 %s32, %s33
    %p35 = scmp.eq.s32.totalorder %s34, 0
    %s37 = sadd.s32 %s36, 1
    %s38 = scalar_select %p35, %s36, %s37
    %p41 = pneg %p35
    %p42 = scmp.eq.s32.totalorder %s12, 1
    %p43 = por %p41, %p42
    %p44 = scmp.ne.s32.totalorder %s36, %s39
    %p45 = scmp.eq.s32.totalorder %s12, 0
    %p46 = por %p44, %p45
    %p47 = scmp.ne.s32.totalorder %s36, %s39
    %p48 = scmp.eq.s32.totalorder %s17, 1
    %p49 = por %p47, %p48
    %p50 = scmp.ne.s32.totalorder %s39, %s40
    %p51 = scmp.eq.s32.totalorder %s17, 0
    %p52 = por %p50, %p51
    %p53 = scmp.ne.s32.totalorder %s39, %s40
    %p54 = scmp.eq.s32.totalorder %s18, 1
    %p55 = por %p53, %p54
    %p57 = scmp.ne.s32.totalorder %s40, %s56
    %p58 = scmp.eq.s32.totalorder %s18, 0
    %p59 = por %p57, %p58
    %s60 = ssub.s32 %s19, %s31
    %s61 = ssub.s32 %s20, %s27
    %s62 = sor.u32 %s60, %s61
    %p63 = scmp.eq.s32.totalorder %s62, 0
    %s65 = sadd.s32 %s64, 1
    %s66 = scalar_select %p63, %s64, %s65
    %p69 = pneg %p63
    %p70 = scmp.eq.s32.totalorder %s12, 1
    %p71 = por %p69, %p70
    %p72 = scmp.ne.s32.totalorder %s64, %s67
    %p73 = scmp.eq.s32.totalorder %s12, 0
    %p74 = por %p72, %p73
    %p75 = scmp.ne.s32.totalorder %s64, %s67
    %p76 = scmp.eq.s32.totalorder %s17, 1
    %p77 = por %p75, %p76
    %p78 = scmp.ne.s32.totalorder %s67, %s68
    %p79 = scmp.eq.s32.totalorder %s17, 0
    %p80 = por %p78, %p79
    %p81 = scmp.ne.s32.totalorder %s67, %s68
    %p82 = scmp.eq.s32.totalorder %s18, 1
    %p83 = por %p81, %p82
    %p85 = scmp.ne.s32.totalorder %s68, %s84
    %p86 = scmp.eq.s32.totalorder %s18, 0
    %p87 = por %p85, %p86
    %s89 = sadd.s32 %s88, 1
    %p92 = scmp.eq.s32.totalorder %s12, 1
    %p93 = scmp.ne.s32.totalorder %s88, %s90
    %p94 = scmp.eq.s32.totalorder %s12, 0
    %p95 = por %p93, %p94
    %p96 = scmp.ne.s32.totalorder %s88, %s90
    %p97 = scmp.eq.s32.totalorder %s17, 1
    %p98 = por %p96, %p97
    %p99 = scmp.ne.s32.totalorder %s90, %s91
    %p100 = scmp.eq.s32.totalorder %s17, 0
    %p101 = por %p99, %p100
    %p102 = scmp.ne.s32.totalorder %s90, %s91
    %p103 = scmp.eq.s32.totalorder %s18, 1
    %p104 = por %p102, %p103
    %p106 = scmp.ne.s32.totalorder %s91, %s105
    %p107 = scmp.eq.s32.totalorder %s18, 0
    %p108 = por %p106, %p107
    %s110 = sadd.s32 %s109, 1
    %p113 = scmp.eq.s32.totalorder %s12, 1
    %p114 = scmp.ne.s32.totalorder %s109, %s111
    %p115 = scmp.eq.s32.totalorder %s12, 0
    %p116 = por %p114, %p115
    %p117 = scmp.ne.s32.totalorder %s109, %s111
    %p118 = scmp.eq.s32.totalorder %s17, 1
    %p119 = por %p117, %p118
    %p120 = scmp.ne.s32.totalorder %s111, %s112
    %p121 = scmp.eq.s32.totalorder %s17, 0
    %p122 = por %p120, %p121
    %p123 = scmp.ne.s32.totalorder %s111, %s112
    %p124 = scmp.eq.s32.totalorder %s18, 1
    %p125 = por %p123, %p124
    %p127 = scmp.ne.s32.totalorder %s112, %s126
    %p128 = scmp.eq.s32.totalorder %s18, 0
    %p129 = por %p127, %p128
    %s130 = ssub.s32 %s19, %s31
    %s131 = ssub.s32 %s20, %s27
    %s132 = sor.u32 %s130, %s131
    %p133 = scmp.eq.s32.totalorder %s132, 0
    %s135 = sadd.s32 %s134, 1
    %s136 = scalar_select %p133, %s134, %s135
    %p139 = pneg %p133
    %p140 = scmp.eq.s32.totalorder %s12, 1
    %p141 = por %p139, %p140
    %p142 = scmp.ne.s32.totalorder %s134, %s137
    %p143 = scmp.eq.s32.totalorder %s12, 0
    %p144 = por %p142, %p143
    %p145 = scmp.ne.s32.totalorder %s134, %s137
    %p146 = scmp.eq.s32.totalorder %s17, 1
    %p147 = por %p145, %p146
    %p148 = scmp.ne.s32.totalorder %s137, %s138
    %p149 = scmp.eq.s32.totalorder %s17, 0
    %p150 = por %p148, %p149
    %p151 = scmp.ne.s32.totalorder %s137, %s138
    %p152 = scmp.eq.s32.totalorder %s18, 1
    %p153 = por %p151, %p152
    %p155 = scmp.ne.s32.totalorder %s138, %s154
    %p156 = scmp.eq.s32.totalorder %s18, 0
    %p157 = por %p155, %p156
    %s158 = ssub.s32 %s19, %s31
    %s159 = ssub.s32 %s20, %s27
    %s160 = sor.u32 %s158, %s159
    %p161 = scmp.eq.s32.totalorder %s160, 0
    %s163 = sadd.s32 %s162, 1
    %s164 = scalar_select %p161, %s162, %s163
    %p167 = pneg %p161
    %p168 = scmp.eq.s32.totalorder %s12, 1
    %p169 = por %p167, %p168
    %p170 = scmp.ne.s32.totalorder %s162, %s165
    %p171 = scmp.eq.s32.totalorder %s12, 0
    %p172 = por %p170, %p171
    %p173 = scmp.ne.s32.totalorder %s162, %s165
    %p174 = scmp.eq.s32.totalorder %s17, 1
    %p175 = por %p173, %p174
    %p176 = scmp.ne.s32.totalorder %s165, %s166
    %p177 = scmp.eq.s32.totalorder %s17, 0
    %p178 = por %p176, %p177
    %p179 = scmp.ne.s32.totalorder %s165, %s166
    %p180 = scmp.eq.s32.totalorder %s18, 1
    %p181 = por %p179, %p180
    %p183 = scmp.ne.s32.totalorder %s166, %s182
    %p184 = scmp.eq.s32.totalorder %s18, 0
    %p185 = por %p183, %p184
    %p186 = scmp.le.s32.totalorder 1, %s12
    %p187 = scmp.lt.s32.totalorder %s12, 3
    %p188 = pnand %p186, %p187
    %p189 = pneg %p188
    // Predicated region
    $region9: #{depthwise_separable_conv.2} parent=5 // pred_check
      _
    $region10: #{depthwise_separable_conv.2} parent=5 // pred_check_branch
      %191 = sbr.rel (%p188) target = $region12
    $region11: #{depthwise_separable_conv.2} parent=5 // pred_region
      %s192 = ssub.s32 %s12, 1
      // Predicated region
      $region13: #{depthwise_separable_conv.2} parent=11 // pred_check
        %p193 = pneg %p101
      $region14: #{depthwise_separable_conv.2} parent=11 // pred_check_branch
        %195 = sbr.rel (%p193) target = $region16
      $region15: #{depthwise_separable_conv.2} parent=11 // pred_region
        _
      $region16: #{depthwise_separable_conv.2} parent=11 // pred_fallthru
        _
      // Predicated region
      $region17: #{depthwise_separable_conv.2} parent=11 // pred_check
        %p196 = pneg %p122
      $region18: #{depthwise_separable_conv.2} parent=11 // pred_check_branch
        %198 = sbr.rel (%p196) target = $region20
      $region19: #{depthwise_separable_conv.2} parent=11 // pred_region
        _
      $region20: #{depthwise_separable_conv.2} parent=11 // pred_fallthru
        _
    $region12: #{depthwise_separable_conv.2} parent=5 // pred_fallthru
      _
    %p199 = scmp.lt.s32.totalorder %s12, 2
    // Predicated region
    $region21: #{depthwise_separable_conv.2} parent=5 // pred_check
      %p200 = pneg %p199
    $region22: #{depthwise_separable_conv.2} parent=5 // pred_check_branch
      %202 = sbr.rel (%p200) target = $region24
    $region23: #{depthwise_separable_conv.2} parent=5 // pred_region
      // Predicated region
      $region25: #{depthwise_separable_conv.2} parent=23 // pred_check
        %p203 = pneg %p46
      $region26: #{depthwise_separable_conv.2} parent=23 // pred_check_branch
        %205 = sbr.rel (%p203) target = $region28
      $region27: #{depthwise_separable_conv.2} parent=23 // pred_region
        %s206 = smul.u32 2, %s20
        %p207 = scmp.lt.s32.totalorder %s19, 1
        %s208 = scalar_select %p207, %s19, 1
        %p209 = scmp.lt.s32.totalorder %s206, 1
        %s210 = scalar_select %p209, %s206, 1
        %s211 = smul.addr %s208, 2
        %s212 = sadd.s32 %s210, %s211
        %s213 = smul.addr %s212, 8
        %s214 = scalar_lea.vmem %s0, %s213
        %s215 = smul.u32 2, %s20
      $region28: #{depthwise_separable_conv.2} parent=23 // pred_fallthru
        _
      // Predicated region
      $region29: #{depthwise_separable_conv.2} parent=23 // pred_check
        %p216 = pneg %p74
      $region30: #{depthwise_separable_conv.2} parent=23 // pred_check_branch
        %218 = sbr.rel (%p216) target = $region32
      $region31: #{depthwise_separable_conv.2} parent=23 // pred_region
        %p219 = scmp.lt.s32.totalorder %s19, 1
        %s220 = scalar_select %p219, %s19, 1
        %p221 = scmp.lt.s32.totalorder %s20, 0
        %s222 = scalar_select %p221, %s20, 0
        %s223 = sadd.s32 %s222, %s220
        %s224 = smul.addr %s223, 2
        %s225 = scalar_lea.vmem %s1, %s224
      $region32: #{depthwise_separable_conv.2} parent=23 // pred_fallthru
        _
    $region24: #{depthwise_separable_conv.2} parent=5 // pred_fallthru
      _
    %p226 = scmp.le.s32.totalorder 1, %s12
    %p227 = scmp.lt.s32.totalorder %s12, 3
    %p228 = pnand %p226, %p227
    %p229 = pneg %p228
    // Predicated region
    $region33: #{depthwise_separable_conv.2} parent=5 // pred_check
      _
    $region34: #{depthwise_separable_conv.2} parent=5 // pred_check_branch
      %231 = sbr.rel (%p228) target = $region36
    $region35: #{depthwise_separable_conv.2} parent=5 // pred_region
      %s232 = ssub.s32 %s12, 1
      %s233 = smul.u32 2, %s22
      %p234 = scmp.lt.s32.totalorder %s21, 1
      %s235 = scalar_select %p234, %s21, 1
      %p236 = scmp.lt.s32.totalorder %s233, 1
      %s237 = scalar_select %p236, %s233, 1
      %s238 = smul.addr %s235, 2
      %s239 = sadd.s32 %s237, %s238
      %s240 = smul.addr %s239, 8
      %s241 = scalar_lea.vmem %s0, %s240
      %p242 = pneg %p52
      %p243 = pneg %p49
      %p244 = scmp.lt.s32.totalorder %s21, 1
      %s245 = scalar_select %p244, %s21, 1
      %p246 = scmp.lt.s32.totalorder %s22, 0
      %s247 = scalar_select %p246, %s22, 0
      %s248 = sadd.s32 %s247, %s245
      %s249 = smul.addr %s248, 2
      %s250 = scalar_lea.vmem %s1, %s249
      %p251 = pneg %p80
      %p252 = pneg %p77
      %p253 = pneg %p101
      %p254 = pneg %p98
      %p255 = pneg %p122
      %p256 = pneg %p119
      %p257 = pneg %p150
      %p258 = pneg %p147
      %s259 = smul.u32 2, %s22
      %p260 = scmp.lt.s32.totalorder %s21, 1
      %s261 = scalar_select %p260, %s21, 1
      %p262 = scmp.lt.s32.totalorder %s259, 1
      %s263 = scalar_select %p262, %s259, 1
      %s264 = smul.addr %s261, 2
      %s265 = sadd.s32 %s263, %s264
      %s266 = smul.addr %s265, 8
      %s267 = scalar_lea.vmem %s4, %s266
      %p268 = pneg %p178
      %p269 = pneg %p175
      %p270 = scmp.lt.s32.totalorder %s21, 1
      %s271 = scalar_select %p270, %s21, 1
      %p272 = scmp.lt.s32.totalorder %s22, 0
      %s273 = scalar_select %p272, %s22, 0
      %s274 = sadd.s32 %s273, %s271
      %s275 = smul.addr %s274, 2
      %s276 = scalar_lea.vmem %s5, %s275
      %s277 = smul.u32 2, %s22
      %p278 = scmp.lt.s32.totalorder %s21, 1
      %s279 = scalar_select %p278, %s21, 1
      %p280 = scmp.lt.s32.totalorder %s277, 1
      %s281 = scalar_select %p280, %s277, 1
      %s282 = smul.addr %s279, 2
      %s283 = sadd.s32 %s281, %s282
      %s284 = smul.addr %s283, 8
      %s285 = scalar_lea.vmem %s0, %s284
      %s286 = smul.u32 2, %s22
      %p287 = scmp.lt.s32.totalorder %s21, 1
      %s288 = scalar_select %p287, %s21, 1
      %p289 = scmp.lt.s32.totalorder %s22, 0
      %s290 = scalar_select %p289, %s22, 0
      %s291 = sadd.s32 %s290, %s288
      %s292 = smul.addr %s291, 2
      %s293 = scalar_lea.vmem %s1, %s292
      %s294 = smul.u32 2, %s22
      %p295 = scmp.lt.s32.totalorder %s21, 1
      %s296 = scalar_select %p295, %s21, 1
      %p297 = scmp.lt.s32.totalorder %s294, 1
      %s298 = scalar_select %p297, %s294, 1
      %s299 = smul.addr %s296, 2
      %s300 = sadd.s32 %s298, %s299
      %s301 = smul.addr %s300, 8
      %s302 = scalar_lea.vmem %s4, %s301
      %s303 = smul.u32 2, %s22
      %p304 = scmp.lt.s32.totalorder %s21, 1
      %s305 = scalar_select %p304, %s21, 1
      %p306 = scmp.lt.s32.totalorder %s22, 0
      %s307 = scalar_select %p306, %s22, 0
      %s308 = sadd.s32 %s307, %s305
      %s309 = smul.addr %s308, 2
      %s310 = scalar_lea.vmem %s5, %s309
      %v311 = vld [vmem:[%s285] sm:$0xff]
      %v312 = vld [vmem:[%s285 + $0x8] sm:$0xff]
      %v313 = vld [vmem:[%s293] sm:$0x3]
      %vm316 = vcmask 1040384
      %v317 = vrot.slane %v311, 7
      %v318 = vrot.slane %v312, 7
      %v319 = vsel %vm316, %v317, %v318
      %v321 = vsel %vm316, %v313, %v317
      %vm322 = vcmask 1046528
      %v323 = vrot.slane %v311, 1
      %v324 = vrot.slane %v312, 1
      %v325 = vsel %vm322, %v323, %v324
      %v328 = vrot.slane %v313, 2
      %v330 = vsel %vm322, %v324, %v328
      %v331 = vld [vmem:[%s2] sm:$0xff]
      %v332 = vld [vmem:[%s2 + $0x8] sm:$0xff]
      %v333 = vld [vmem:[%s2 + $0x10] sm:$0xff]
      %v334 = vld [vmem:[%s2 + $0x18] sm:$0xff]
      %v335 = vld [vmem:[%s2 + $0x20] sm:$0xff]
      %v336 = vld [vmem:[%s2 + $0x28] sm:$0xff]
      %v337 = vld [vmem:[%s2 + $0x30] sm:$0xff]
      %v338 = vld [vmem:[%s2 + $0x38] sm:$0xff]
      %s339 = scalar_lea.vmem %s2, 64
      %v340 = vld [vmem:[%s339] sm:$0xff]
      %v341 = vld [vmem:[%s339 + $0x8] sm:$0xff]
      %v342 = vld [vmem:[%s339 + $0x10] sm:$0xff]
      %v343 = vld [vmem:[%s339 + $0x18] sm:$0xff]
      %v344 = vld [vmem:[%s339 + $0x20] sm:$0xff]
      %v345 = vld [vmem:[%s339 + $0x28] sm:$0xff]
      %v346 = vld [vmem:[%s339 + $0x30] sm:$0xff]
      %v347 = vld [vmem:[%s339 + $0x38] sm:$0xff]
      %vm348 = vcmask 523264
      %v349 = vsel %vm348, %v311, 0
      %v351 = vsel %vm348, %v312, 0
      %353 = vmatprep.subr.mxu0 0.0
      %354 = vmatpush1.msra.mxu0 0.0
      %355 = vmatprep.subr.mxu0 0.0
      %356 = vmatpush1.msra.mxu0 0.0
      %357 = vmatprep.subr.mxu0 0.0
      %358 = vmatpush1.msra.mxu0 0.0
      %359 = vmatprep.subr.mxu0 0.0
      %360 = vmatpush1.msra.mxu0 0.0
      %361 = vmatprep.subr.mxu0 0.0
      %362 = vmatpush1.msra.mxu0 0.0
      %363 = vmatprep.subr.mxu0 0.0
      %364 = vmatpush1.msra.mxu0 0.0
      %365 = vmatprep.subr.mxu0 0.0
      %366 = vmatpush1.msra.mxu0 0.0
      %367 = vmatprep.subr.mxu0 0.0
      %368 = vmatpush1.msra.mxu0 0.0
      %369 = vmatprep.subr.mxu0 0.0
      %370 = vmatpush1.msra.mxu0 %v347
      %371 = vmatprep.subr.mxu0 0.0
      %372 = vmatpush1.msra.mxu0 %v346
      %373 = vmatprep.subr.mxu0 0.0
      %374 = vmatpush1.msra.mxu0 %v345
      %375 = vmatprep.subr.mxu0 0.0
      %376 = vmatpush1.msra.mxu0 %v344
      %377 = vmatprep.subr.mxu0 0.0
      %378 = vmatpush1.msra.mxu0 %v343
      %379 = vmatprep.subr.mxu0 0.0
      %380 = vmatpush1.msra.mxu0 %v342
      %381 = vmatprep.subr.mxu0 0.0
      %382 = vmatpush1.msra.mxu0 %v341
      %383 = vmatprep.subr.mxu0 0.0
      %384 = vmatpush1.msra.mxu0 %v340
      %385 = vmatprep.subr.mxu0 0.0
      %386 = vmatpush2.msra.mxu0 0.0
      %387 = vmatprep.subr.mxu0 0.0
      %388 = vmatpush2.msra.mxu0 0.0
      %389 = vmatprep.subr.mxu0 0.0
      %390 = vmatpush2.msra.mxu0 0.0
      %391 = vmatprep.subr.mxu0 0.0
      %392 = vmatpush2.msra.mxu0 0.0
      %393 = vmatprep.subr.mxu0 0.0
      %394 = vmatpush2.msra.mxu0 0.0
      %395 = vmatprep.subr.mxu0 0.0
      %396 = vmatpush2.msra.mxu0 0.0
      %397 = vmatprep.subr.mxu0 0.0
      %398 = vmatpush2.msra.mxu0 0.0
      %399 = vmatprep.subr.mxu0 0.0
      %400 = vmatpush2.msra.mxu0 0.0
      %401 = vmatprep.subr.mxu0 0.0
      %402 = vmatpush2.msra.mxu0 0.0
      %403 = vmatprep.subr.mxu0 0.0
      %404 = vmatpush2.msra.mxu0 0.0
      %405 = vmatprep.subr.mxu0 0.0
      %406 = vmatpush2.msra.mxu0 0.0
      %407 = vmatprep.subr.mxu0 0.0
      %408 = vmatpush2.msra.mxu0 0.0
      %409 = vmatprep.subr.mxu0 0.0
      %410 = vmatpush2.msra.mxu0 0.0
      %411 = vmatprep.subr.mxu0 0.0
      %412 = vmatpush2.msra.mxu0 0.0
      %413 = vmatprep.subr.mxu0 0.0
      %414 = vmatpush2.msra.mxu0 0.0
      %415 = vmatprep.subr.mxu0 0.0
      %416 = vmatpush2.msra.mxu0 0.0
      %417 = vmatprep.mubr.f32.mxu0 0.0
      %418 = vmatmul.mubr.f32.gmra.mxu0 %v349
      %v419 = vpop.f32.mrf.mxu0
      %v420 = vadd.f32 0.0, %v419
      %v421 = vpop.f32.mrf.mxu0
      %422 = vmatprep.mubr.f32.mxu0 0.0
      %423 = vmatmul.mubr.f32.gmra.mxu0 %v351
      %v424 = vpop.f32.mrf.mxu0
      %v425 = vadd.f32 0.0, %v424
      %v426 = vpop.f32.mrf.mxu0
      %427 = vdwg.mxu0
      %v429 = vsel %vm348, %v321, 0
      %v431 = vsel %vm348, %v319, 0
      %433 = vmatprep.subr.mxu0 0.0
      %434 = vmatpush1.msra.mxu0 0.0
      %435 = vmatprep.subr.mxu0 0.0
      %436 = vmatpush1.msra.mxu0 0.0
      %437 = vmatprep.subr.mxu0 0.0
      %438 = vmatpush1.msra.mxu0 0.0
      %439 = vmatprep.subr.mxu0 0.0
      %440 = vmatpush1.msra.mxu0 0.0
      %441 = vmatprep.subr.mxu0 0.0
      %442 = vmatpush1.msra.mxu0 0.0
      %443 = vmatprep.subr.mxu0 0.0
      %444 = vmatpush1.msra.mxu0 0.0
      %445 = vmatprep.subr.mxu0 0.0
      %446 = vmatpush1.msra.mxu0 0.0
      %447 = vmatprep.subr.mxu0 0.0
      %448 = vmatpush1.msra.mxu0 0.0
      %449 = vmatprep.subr.mxu0 0.0
      %450 = vmatpush1.msra.mxu0 %v338
      %451 = vmatprep.subr.mxu0 0.0
      %452 = vmatpush1.msra.mxu0 %v337
      %453 = vmatprep.subr.mxu0 0.0
      %454 = vmatpush1.msra.mxu0 %v336
      %455 = vmatprep.subr.mxu0 0.0
      %456 = vmatpush1.msra.mxu0 %v335
      %457 = vmatprep.subr.mxu0 0.0
      %458 = vmatpush1.msra.mxu0 %v334
      %459 = vmatprep.subr.mxu0 0.0
      %460 = vmatpush1.msra.mxu0 %v333
      %461 = vmatprep.subr.mxu0 0.0
      %462 = vmatpush1.msra.mxu0 %v332
      %463 = vmatprep.subr.mxu0 0.0
      %464 = vmatpush1.msra.mxu0 %v331
      %465 = vmatprep.subr.mxu0 0.0
      %466 = vmatpush2.msra.mxu0 0.0
      %467 = vmatprep.subr.mxu0 0.0
      %468 = vmatpush2.msra.mxu0 0.0
      %469 = vmatprep.subr.mxu0 0.0
      %470 = vmatpush2.msra.mxu0 0.0
      %471 = vmatprep.subr.mxu0 0.0
      %472 = vmatpush2.msra.mxu0 0.0
      %473 = vmatprep.subr.mxu0 0.0
      %474 = vmatpush2.msra.mxu0 0.0
      %475 = vmatprep.subr.mxu0 0.0
      %476 = vmatpush2.msra.mxu0 0.0
      %477 = vmatprep.subr.mxu0 0.0
      %478 = vmatpush2.msra.mxu0 0.0
      %479 = vmatprep.subr.mxu0 0.0
      %480 = vmatpush2.msra.mxu0 0.0
      %481 = vmatprep.subr.mxu0 0.0
      %482 = vmatpush2.msra.mxu0 0.0
      %483 = vmatprep.subr.mxu0 0.0
      %484 = vmatpush2.msra.mxu0 0.0
      %485 = vmatprep.subr.mxu0 0.0
      %486 = vmatpush2.msra.mxu0 0.0
      %487 = vmatprep.subr.mxu0 0.0
      %488 = vmatpush2.msra.mxu0 0.0
      %489 = vmatprep.subr.mxu0 0.0
      %490 = vmatpush2.msra.mxu0 0.0
      %491 = vmatprep.subr.mxu0 0.0
      %492 = vmatpush2.msra.mxu0 0.0
      %493 = vmatprep.subr.mxu0 0.0
      %494 = vmatpush2.msra.mxu0 0.0
      %495 = vmatprep.subr.mxu0 0.0
      %496 = vmatpush2.msra.mxu0 0.0
      %497 = vmatprep.mubr.f32.mxu0 0.0
      %498 = vmatmul.mubr.f32.gmra.mxu0 %v429
      %v499 = vpop.f32.mrf.mxu0
      %v500 = vadd.f32 %v420, %v499
      %v501 = vpop.f32.mrf.mxu0
      %502 = vmatprep.mubr.f32.mxu0 0.0
      %503 = vmatmul.mubr.f32.gmra.mxu0 %v431
      %v504 = vpop.f32.mrf.mxu0
      %v505 = vadd.f32 %v425, %v504
      %v506 = vpop.f32.mrf.mxu0
      %507 = vdwg.mxu0
      %s508 = scalar_lea.vmem %s2, 128
      %v509 = vld [vmem:[%s508] sm:$0xff]
      %v510 = vld [vmem:[%s508 + $0x8] sm:$0xff]
      %v511 = vld [vmem:[%s508 + $0x10] sm:$0xff]
      %v512 = vld [vmem:[%s508 + $0x18] sm:$0xff]
      %v513 = vld [vmem:[%s508 + $0x20] sm:$0xff]
      %v514 = vld [vmem:[%s508 + $0x28] sm:$0xff]
      %v515 = vld [vmem:[%s508 + $0x30] sm:$0xff]
      %v516 = vld [vmem:[%s508 + $0x38] sm:$0xff]
      %v517 = vsel %vm348, %v325, 0
      %v520 = vsel %vm348, %v330, 0
      %522 = vmatprep.subr.mxu0 0.0
      %523 = vmatpush1.msra.mxu0 0.0
      %524 = vmatprep.subr.mxu0 0.0
      %525 = vmatpush1.msra.mxu0 0.0
      %526 = vmatprep.subr.mxu0 0.0
      %527 = vmatpush1.msra.mxu0 0.0
      %528 = vmatprep.subr.mxu0 0.0
      %529 = vmatpush1.msra.mxu0 0.0
      %530 = vmatprep.subr.mxu0 0.0
      %531 = vmatpush1.msra.mxu0 0.0
      %532 = vmatprep.subr.mxu0 0.0
      %533 = vmatpush1.msra.mxu0 0.0
      %534 = vmatprep.subr.mxu0 0.0
      %535 = vmatpush1.msra.mxu0 0.0
      %536 = vmatprep.subr.mxu0 0.0
      %537 = vmatpush1.msra.mxu0 0.0
      %538 = vmatprep.subr.mxu0 0.0
      %539 = vmatpush1.msra.mxu0 %v516
      %540 = vmatprep.subr.mxu0 0.0
      %541 = vmatpush1.msra.mxu0 %v515
      %542 = vmatprep.subr.mxu0 0.0
      %543 = vmatpush1.msra.mxu0 %v514
      %544 = vmatprep.subr.mxu0 0.0
      %545 = vmatpush1.msra.mxu0 %v513
      %546 = vmatprep.subr.mxu0 0.0
      %547 = vmatpush1.msra.mxu0 %v512
      %548 = vmatprep.subr.mxu0 0.0
      %549 = vmatpush1.msra.mxu0 %v511
      %550 = vmatprep.subr.mxu0 0.0
      %551 = vmatpush1.msra.mxu0 %v510
      %552 = vmatprep.subr.mxu0 0.0
      %553 = vmatpush1.msra.mxu0 %v509
      %554 = vmatprep.subr.mxu0 0.0
      %555 = vmatpush2.msra.mxu0 0.0
      %556 = vmatprep.subr.mxu0 0.0
      %557 = vmatpush2.msra.mxu0 0.0
      %558 = vmatprep.subr.mxu0 0.0
      %559 = vmatpush2.msra.mxu0 0.0
      %560 = vmatprep.subr.mxu0 0.0
      %561 = vmatpush2.msra.mxu0 0.0
      %562 = vmatprep.subr.mxu0 0.0
      %563 = vmatpush2.msra.mxu0 0.0
      %564 = vmatprep.subr.mxu0 0.0
      %565 = vmatpush2.msra.mxu0 0.0
      %566 = vmatprep.subr.mxu0 0.0
      %567 = vmatpush2.msra.mxu0 0.0
      %568 = vmatprep.subr.mxu0 0.0
      %569 = vmatpush2.msra.mxu0 0.0
      %570 = vmatprep.subr.mxu0 0.0
      %571 = vmatpush2.msra.mxu0 0.0
      %572 = vmatprep.subr.mxu0 0.0
      %573 = vmatpush2.msra.mxu0 0.0
      %574 = vmatprep.subr.mxu0 0.0
      %575 = vmatpush2.msra.mxu0 0.0
      %576 = vmatprep.subr.mxu0 0.0
      %577 = vmatpush2.msra.mxu0 0.0
      %578 = vmatprep.subr.mxu0 0.0
      %579 = vmatpush2.msra.mxu0 0.0
      %580 = vmatprep.subr.mxu0 0.0
      %581 = vmatpush2.msra.mxu0 0.0
      %582 = vmatprep.subr.mxu0 0.0
      %583 = vmatpush2.msra.mxu0 0.0
      %584 = vmatprep.subr.mxu0 0.0
      %585 = vmatpush2.msra.mxu0 0.0
      %586 = vmatprep.mubr.f32.mxu0 0.0
      %587 = vmatmul.mubr.f32.gmra.mxu0 %v517
      %v588 = vpop.f32.mrf.mxu0
      %v589 = vadd.f32 0.0, %v588
      %v590 = vpop.f32.mrf.mxu0
      %591 = vmatprep.mubr.f32.mxu0 0.0
      %592 = vmatmul.mubr.f32.gmra.mxu0 %v520
      %v593 = vpop.f32.mrf.mxu0
      %v594 = vadd.f32 0.0, %v593
      %v595 = vpop.f32.mrf.mxu0
      %596 = vdwg.mxu0
      %v597 = vadd.f32 %v500, %v589
      %v598 = vadd.f32 %v505, %v594
      %v599 = vld [vmem:[%s3] sm:$0x1]
      %v601 = vlaneseq
      %v602 = vshrl.u32 %v601, 7
      %v603 = vsub.s32 0, %v602
      %v604 = vrot.slane %v599, %v603
      %v606 = vadd.f32 %v597, %v604
      %v607 = vadd.f32 %v598, %v604
      %608 = vst [vmem:[%s302] sm:$0xff] %v606
      %609 = vst [vmem:[%s302 + $0x8] sm:$0xff] %v607
      %v610 = vadd.f32 %v597, %v598
      %v611 = vrot.slane %v610, 4
      %v612 = vadd.f32 %v610, %v611
      %v613 = vrot.slane %v612, 2
      %v614 = vadd.f32 %v612, %v613
      %v615 = vrot.slane %v614, 1
      %v616 = vadd.f32 %v614, %v615
      %v617 = vmul.f32 %v597, %v597
      %v618 = vmul.f32 %v598, %v598
      %v619 = vadd.f32 %v617, %v618
      %v620 = vrot.slane %v619, 4
      %v621 = vadd.f32 %v619, %v620
      %v622 = vrot.slane %v621, 2
      %v623 = vadd.f32 %v621, %v622
      %v624 = vrot.slane %v623, 1
      %v625 = vadd.f32 %v623, %v624
      %v626 = vsel %vm316, %v616, %v625
      %627 = vst [vmem:[%s310] sm:$0x3] %v626
      %s628 = smul.u32 2, %s22
      %p629 = scmp.lt.s32.totalorder %s21, 1
      %s630 = scalar_select %p629, %s21, 1
      %p631 = scmp.lt.s32.totalorder %s628, 1
      %s632 = scalar_select %p631, %s628, 1
      %s633 = smul.addr %s630, 2
      %s634 = sadd.s32 %s632, %s633
      %s635 = smul.addr %s634, 8
      %s636 = scalar_lea.vmem %s4, %s635
      %p637 = scmp.lt.s32.totalorder %s21, 1
      %s638 = scalar_select %p637, %s21, 1
      %p639 = scmp.lt.s32.totalorder %s22, 0
      %s640 = scalar_select %p639, %s22, 0
      %s641 = sadd.s32 %s640, %s638
      %s642 = smul.addr %s641, 2
      %s643 = scalar_lea.vmem %s5, %s642
      // Predicated region
      $region37: #{depthwise_separable_conv.2} parent=35 // pred_check
        %p644 = pneg %p147
      $region38: #{depthwise_separable_conv.2} parent=35 // pred_check_branch
        %646 = sbr.rel (%p644) target = $region40
      $region39: #{depthwise_separable_conv.2} parent=35 // pred_region
        %s647 = smul.u32 2, %s22
      $region40: #{depthwise_separable_conv.2} parent=35 // pred_fallthru
        _
      // Predicated region
      $region41: #{depthwise_separable_conv.2} parent=35 // pred_check
        %p648 = pneg %p175
      $region42: #{depthwise_separable_conv.2} parent=35 // pred_check_branch
        %650 = sbr.rel (%p648) target = $region44
      $region43: #{depthwise_separable_conv.2} parent=35 // pred_region
        _
      $region44: #{depthwise_separable_conv.2} parent=35 // pred_fallthru
        _
    $region36: #{depthwise_separable_conv.2} parent=5 // pred_fallthru
      _
    %p651 = scmp.le.s32.totalorder 2, %s12
    // Predicated region
    $region45: #{depthwise_separable_conv.2} parent=5 // pred_check
      %p652 = pneg %p651
    $region46: #{depthwise_separable_conv.2} parent=5 // pred_check_branch
      %654 = sbr.rel (%p652) target = $region48
    $region47: #{depthwise_separable_conv.2} parent=5 // pred_region
      %s655 = ssub.s32 %s12, 2
      // Predicated region
      $region49: #{depthwise_separable_conv.2} parent=47 // pred_check
        %p656 = pneg %p153
      $region50: #{depthwise_separable_conv.2} parent=47 // pred_check_branch
        %658 = sbr.rel (%p656) target = $region52
      $region51: #{depthwise_separable_conv.2} parent=47 // pred_region
        %s659 = smul.u32 2, %s24
        %p660 = scmp.lt.s32.totalorder %s23, 1
        %s661 = scalar_select %p660, %s23, 1
        %p662 = scmp.lt.s32.totalorder %s659, 1
        %s663 = scalar_select %p662, %s659, 1
        %s664 = smul.addr %s661, 2
        %s665 = sadd.s32 %s663, %s664
        %s666 = smul.addr %s665, 8
        %s667 = scalar_lea.vmem %s4, %s666
      $region52: #{depthwise_separable_conv.2} parent=47 // pred_fallthru
        _
      // Predicated region
      $region53: #{depthwise_separable_conv.2} parent=47 // pred_check
        %p668 = pneg %p181
      $region54: #{depthwise_separable_conv.2} parent=47 // pred_check_branch
        %670 = sbr.rel (%p668) target = $region56
      $region55: #{depthwise_separable_conv.2} parent=47 // pred_region
        %p671 = scmp.lt.s32.totalorder %s23, 1
        %s672 = scalar_select %p671, %s23, 1
        %p673 = scmp.lt.s32.totalorder %s24, 0
        %s674 = scalar_select %p673, %s24, 0
        %s675 = sadd.s32 %s674, %s672
        %s676 = smul.addr %s675, 2
        %s677 = scalar_lea.vmem %s5, %s676
      $region56: #{depthwise_separable_conv.2} parent=47 // pred_fallthru
        _
    $region48: #{depthwise_separable_conv.2} parent=5 // pred_fallthru
      _
  $region6: #{depthwise_separable_conv.2} parent=0 // loop_footer
    %s16 = sadd.s32 1, %s12
  $region7: #{depthwise_separable_conv.2} parent=0 // loop_footer_branch
    %11 = sbr.rel target = $region3
  $region8: #{depthwise_separable_conv.2} parent=0 // loop_exit
    _

</llo_original>
